<compile_context>
chip_gen: v7x
topology: tpu7x:2x2x1
jax: 0.10.0
libtpu: 0.0.40
codegen_flags: <defaults>
</compile_context>

<pallas_src>
import jax
import jax.numpy as jnp
from jax.experimental import pallas as pl
from jax.experimental.pallas import tpu as pltpu


def _vae_kernel(
    x_ref, eps_ref,
    w1_ref, b1_ref, w2_ref, b2_ref,
    w3_ref, b3_ref,                      # fused [mean | logvar] head
    w4_ref, b4_ref, w5_ref, b5_ref, w6_ref, b6_ref,
    recon_ref, stats_ref,                # stats = [mu | logvar] packed slab
):
    latent = eps_ref.shape[-1]
    x = x_ref[...]

    # ---- encode ----
    h1 = jnp.dot(x, w1_ref[...], preferred_element_type=jnp.float32) + b1_ref[...]
    h1 = jnp.maximum(h1, 0.0)
    h2 = jnp.dot(h1, w2_ref[...], preferred_element_type=jnp.float32) + b2_ref[...]
    h2 = jnp.maximum(h2, 0.0)

    # Single matmul for both latent heads (lane-dense N = 2*latent).
    stats = jnp.dot(h2, w3_ref[...], preferred_element_type=jnp.float32) + b3_ref[...]
    mu = stats[:, :latent]
    logvar = stats[:, latent:]

    # ---- reparameterize:  z = mu + eps * exp(0.5 * logvar)  (EUP exp) ----
    z = mu + eps_ref[...] * jnp.exp(0.5 * logvar)

    # ---- decode ----
    h4 = jnp.dot(z, w4_ref[...], preferred_element_type=jnp.float32) + b4_ref[...]
    h4 = jnp.maximum(h4, 0.0)
    h5 = jnp.dot(h4, w5_ref[...], preferred_element_type=jnp.float32) + b5_ref[...]
    h5 = jnp.maximum(h5, 0.0)
    recon = jnp.dot(h5, w6_ref[...], preferred_element_type=jnp.float32) + b6_ref[...]

    recon_ref[...] = recon.astype(recon_ref.dtype)
    stats_ref[...] = stats.astype(stats_ref.dtype)


def _derive_batch_tile(B, input_dim, latent_dim, enc, dec, budget_bytes=24 << 20):
    """Largest batch tile (multiple of 8, capped at 2048) whose per-step
    activation + double-buffered I/O footprint fits a VMEM budget that is safe
    on v7x's 64 MiB/TC as well as v5e/v6e's 128 MiB."""
    io_per_row = 2 * (input_dim + latent_dim + input_dim + 2 * latent_dim)  # 2x-buffered I/O tiles
    act_per_row = enc[0] + enc[1] + 2 * latent_dim + dec[0] + dec[1]        # intermediates
    per_row_bytes = 4 * (io_per_row + act_per_row)
    tb = max(8, min(2048, budget_bytes // per_row_bytes))
    tb = (tb // 8) * 8
    return B if B <= tb else tb


def vae_forward(x, eps, params, *, batch_tile=None):
    """x: [B, input_dim], eps: [B, latent_dim], params: dict of (in,out) weights
    + (1,out) biases. Returns (recon_x, mu, logvar) like the PyTorch VAE.forward."""
    B, input_dim = x.shape
    latent_dim = eps.shape[1]
    enc = (params["w1"].shape[1], params["w2"].shape[1])
    dec = (params["w4"].shape[1], params["w5"].shape[1])

    # Fuse the two latent heads: one matmul, one lane-dense output slab.
    w3 = jnp.concatenate([params["w3m"], params["w3v"]], axis=1)   # (enc1, 2*latent)
    b3 = jnp.concatenate([params["b3m"], params["b3v"]], axis=1)   # (1, 2*latent)

    tb = batch_tile if batch_tile is not None else _derive_batch_tile(
        B, input_dim, latent_dim, enc, dec)
    grid = (pl.cdiv(B, tb),)

    def row_spec(d):
        # Batch-tiled activation tensors: new block every grid step.
        return pl.BlockSpec((tb, d), lambda i: (i, 0))

    def resident_spec(a):
        # Full-shape weight/bias block, constant index_map -> VMEM-resident.
        return pl.BlockSpec(a.shape, lambda i: (0, 0))

    weights = (
        params["w1"], params["b1"], params["w2"], params["b2"],
        w3, b3,
        params["w4"], params["b4"], params["w5"], params["b5"],
        params["w6"], params["b6"],
    )

    in_specs = [row_spec(input_dim), row_spec(latent_dim)] + [resident_spec(w) for w in weights]
    out_specs = (row_spec(input_dim), row_spec(2 * latent_dim))
    out_shape = (
        jax.ShapeDtypeStruct((B, input_dim), jnp.float32),        # recon_x
        jax.ShapeDtypeStruct((B, 2 * latent_dim), jnp.float32),   # [mu | logvar]
    )

    layer_dims = [
        (input_dim, enc[0]), (enc[0], enc[1]), (enc[1], 2 * latent_dim),
        (latent_dim, dec[0]), (dec[0], dec[1]), (dec[1], input_dim),
    ]
    flops = 2 * B * sum(fi * fo for fi, fo in layer_dims)
    bytes_accessed = 4 * (x.size + eps.size + B * input_dim + B * 2 * latent_dim
                          + sum(int(w.size) for w in weights))
    cost = pl.CostEstimate(flops=int(flops),
                           transcendentals=int(B * latent_dim),   # exp(0.5*logvar)
                           bytes_accessed=int(bytes_accessed))

    recon, stats = pl.pallas_call(
        _vae_kernel,
        grid=grid,
        out_shape=out_shape,
        in_specs=in_specs,
        out_specs=out_specs,
        compiler_params=pltpu.CompilerParams(
            dimension_semantics=("parallel",),   # shard batch tiles across TCs
            vmem_limit_bytes=48 << 20,           # explicit (safe on 64 MiB v7x VMEM)
        ),
        cost_estimate=cost,
    )(x, eps, *weights)

    mu = stats[:, :latent_dim]
    logvar = stats[:, latent_dim:]
    return recon, mu, logvar


def init_params(key, input_dim, latent_dim, encoder_units, decoder_units):
    """Deterministic synthetic parameter init. Weights are (in, out), biases (1, out)."""
    dims = [
        ("w1", "b1", input_dim, encoder_units[0]),
        ("w2", "b2", encoder_units[0], encoder_units[1]),
        ("w3m", "b3m", encoder_units[1], latent_dim),
        ("w3v", "b3v", encoder_units[1], latent_dim),
        ("w4", "b4", latent_dim, decoder_units[0]),
        ("w5", "b5", decoder_units[0], decoder_units[1]),
        ("w6", "b6", decoder_units[1], input_dim),
    ]
    params = {}
    keys = jax.random.split(key, len(dims))
    for k, (wn, bn, fin, fout) in zip(keys, dims):
        scale = 1.0 / jnp.sqrt(jnp.float32(fin))
        params[wn] = jax.random.normal(k, (fin, fout), jnp.float32) * scale
        params[bn] = jnp.zeros((1, fout), jnp.float32)
    return params


if __name__ == "__main__":
    # Small shapes consistent with the module's fully-connected forward.
    batch = 8
    input_dim = 32
    latent_dim = 16
    encoder_units = (64, 32)
    decoder_units = (32, 64)

    root = jax.random.PRNGKey(0)
    k_params, k_x, k_eps = jax.random.split(root, 3)

    params = init_params(k_params, input_dim, latent_dim, encoder_units, decoder_units)
    x = jax.random.normal(k_x, (batch, input_dim), jnp.float32)
    # reparameterization noise (torch.randn_like equivalent), drawn outside
    # the kernel so the kernel stays deterministic.
    eps = jax.random.normal(k_eps, (batch, latent_dim), jnp.float32)

    recon_x, mu, logvar = vae_forward(x, eps, params)
    jax.block_until_ready((recon_x, mu, logvar))

    # Pure-JAX reference check (same math, outside Pallas).
    def ref_forward(x, eps, p):
        h1 = jnp.maximum(x @ p["w1"] + p["b1"], 0.0)
        h2 = jnp.maximum(h1 @ p["w2"] + p["b2"], 0.0)
        mu = h2 @ p["w3m"] + p["b3m"]
        logvar = h2 @ p["w3v"] + p["b3v"]
        z = mu + eps * jnp.exp(0.5 * logvar)
        h4 = jnp.maximum(z @ p["w4"] + p["b4"], 0.0)
        h5 = jnp.maximum(h4 @ p["w5"] + p["b5"], 0.0)
        return h5 @ p["w6"] + p["b6"], mu, logvar

    r_ref, mu_ref, lv_ref = ref_forward(x, eps, params)
    assert jnp.allclose(recon_x, r_ref, atol=1e-4, rtol=1e-4)
    assert jnp.allclose(mu, mu_ref, atol=1e-4, rtol=1e-4)
    assert jnp.allclose(logvar, lv_ref, atol=1e-4, rtol=1e-4)

    print("KERNEL_OK")
</pallas_src>

<mosaic_0001>
module attributes {stable_mosaic.version = 11 : i64} {
  func.func @_vae_kernel(%arg0: i32, %arg1: memref<8x32xf32, #tpu.memory_space<vmem>>, %arg2: memref<8x16xf32, #tpu.memory_space<vmem>>, %arg3: memref<32x64xf32, #tpu.memory_space<vmem>>, %arg4: memref<1x64xf32, #tpu.memory_space<vmem>>, %arg5: memref<64x32xf32, #tpu.memory_space<vmem>>, %arg6: memref<1x32xf32, #tpu.memory_space<vmem>>, %arg7: memref<32x32xf32, #tpu.memory_space<vmem>>, %arg8: memref<1x32xf32, #tpu.memory_space<vmem>>, %arg9: memref<16x32xf32, #tpu.memory_space<vmem>>, %arg10: memref<1x32xf32, #tpu.memory_space<vmem>>, %arg11: memref<32x64xf32, #tpu.memory_space<vmem>>, %arg12: memref<1x64xf32, #tpu.memory_space<vmem>>, %arg13: memref<64x32xf32, #tpu.memory_space<vmem>>, %arg14: memref<1x32xf32, #tpu.memory_space<vmem>>, %arg15: memref<8x32xf32, #tpu.memory_space<vmem>>, %arg16: memref<8x32xf32, #tpu.memory_space<vmem>>) attributes {dimension_semantics = [#tpu.dimension_semantics<parallel>], iteration_bounds = array<i64: 1>, scalar_prefetch = 0 : i64, scratch_operands = 0 : i64, tpu.core_type = #tpu.core_type<tc>, window_params = [{transform_indices = @transform_0, window_bounds = array<i64: 8, 32>}, {transform_indices = @transform_1, window_bounds = array<i64: 8, 16>}, {pipeline_mode = #tpu.pipeline_mode<synchronous>, transform_indices = @transform_2, window_bounds = array<i64: 32, 64>}, {pipeline_mode = #tpu.pipeline_mode<synchronous>, transform_indices = @transform_3, window_bounds = array<i64: 1, 64>}, {pipeline_mode = #tpu.pipeline_mode<synchronous>, transform_indices = @transform_4, window_bounds = array<i64: 64, 32>}, {pipeline_mode = #tpu.pipeline_mode<synchronous>, transform_indices = @transform_5, window_bounds = array<i64: 1, 32>}, {pipeline_mode = #tpu.pipeline_mode<synchronous>, transform_indices = @transform_6, window_bounds = array<i64: 32, 32>}, {pipeline_mode = #tpu.pipeline_mode<synchronous>, transform_indices = @transform_7, window_bounds = array<i64: 1, 32>}, {pipeline_mode = #tpu.pipeline_mode<synchronous>, transform_indices = @transform_8, window_bounds = array<i64: 16, 32>}, {pipeline_mode = #tpu.pipeline_mode<synchronous>, transform_indices = @transform_9, window_bounds = array<i64: 1, 32>}, {pipeline_mode = #tpu.pipeline_mode<synchronous>, transform_indices = @transform_10, window_bounds = array<i64: 32, 64>}, {pipeline_mode = #tpu.pipeline_mode<synchronous>, transform_indices = @transform_11, window_bounds = array<i64: 1, 64>}, {pipeline_mode = #tpu.pipeline_mode<synchronous>, transform_indices = @transform_12, window_bounds = array<i64: 64, 32>}, {pipeline_mode = #tpu.pipeline_mode<synchronous>, transform_indices = @transform_13, window_bounds = array<i64: 1, 32>}, {transform_indices = @transform_14, window_bounds = array<i64: 8, 32>}, {transform_indices = @transform_15, window_bounds = array<i64: 8, 32>}]} {
    %c0 = arith.constant 0 : index
    %c0_0 = arith.constant 0 : index
    %0 = vector.load %arg1[%c0, %c0_0] : memref<8x32xf32, #tpu.memory_space<vmem>>, vector<8x32xf32>
    %c0_1 = arith.constant 0 : index
    %c0_2 = arith.constant 0 : index
    %1 = vector.load %arg3[%c0_1, %c0_2] : memref<32x64xf32, #tpu.memory_space<vmem>>, vector<32x64xf32>
    %cst = arith.constant dense<0.000000e+00> : vector<8x64xf32>
    %2 = tpu.matmul %0, %1, %cst {dimension_numbers = #tpu.dot_dimension_numbers<[1], [0], [0], [1], [0, 0, 1, 1], [], []>} : vector<8x32xf32>, vector<32x64xf32>, vector<8x64xf32> -> vector<8x64xf32>
    %c0_3 = arith.constant 0 : index
    %c0_4 = arith.constant 0 : index
    %3 = vector.load %arg4[%c0_3, %c0_4] : memref<1x64xf32, #tpu.memory_space<vmem>>, vector<1x64xf32>
    %4 = vector.broadcast %3 : vector<1x64xf32> to vector<8x64xf32>
    %5 = arith.addf %2, %4 : vector<8x64xf32>
    %cst_5 = arith.constant 0.000000e+00 : f32
    %6 = vector.broadcast %cst_5 : f32 to vector<8x64xf32>
    %7 = arith.maximumf %5, %6 : vector<8x64xf32>
    %c0_6 = arith.constant 0 : index
    %c0_7 = arith.constant 0 : index
    %8 = vector.load %arg5[%c0_6, %c0_7] : memref<64x32xf32, #tpu.memory_space<vmem>>, vector<64x32xf32>
    %cst_8 = arith.constant dense<0.000000e+00> : vector<8x32xf32>
    %9 = tpu.matmul %7, %8, %cst_8 {dimension_numbers = #tpu.dot_dimension_numbers<[1], [0], [0], [1], [0, 0, 1, 1], [], []>} : vector<8x64xf32>, vector<64x32xf32>, vector<8x32xf32> -> vector<8x32xf32>
    %c0_9 = arith.constant 0 : index
    %c0_10 = arith.constant 0 : index
    %10 = vector.load %arg6[%c0_9, %c0_10] : memref<1x32xf32, #tpu.memory_space<vmem>>, vector<1x32xf32>
    %11 = vector.broadcast %10 : vector<1x32xf32> to vector<8x32xf32>
    %12 = arith.addf %9, %11 : vector<8x32xf32>
    %cst_11 = arith.constant 0.000000e+00 : f32
    %13 = vector.broadcast %cst_11 : f32 to vector<8x32xf32>
    %14 = arith.maximumf %12, %13 : vector<8x32xf32>
    %c0_12 = arith.constant 0 : index
    %c0_13 = arith.constant 0 : index
    %15 = vector.load %arg7[%c0_12, %c0_13] : memref<32x32xf32, #tpu.memory_space<vmem>>, vector<32x32xf32>
    %cst_14 = arith.constant dense<0.000000e+00> : vector<8x32xf32>
    %16 = tpu.matmul %14, %15, %cst_14 {dimension_numbers = #tpu.dot_dimension_numbers<[1], [0], [0], [1], [0, 0, 1, 1], [], []>} : vector<8x32xf32>, vector<32x32xf32>, vector<8x32xf32> -> vector<8x32xf32>
    %c0_15 = arith.constant 0 : index
    %c0_16 = arith.constant 0 : index
    %17 = vector.load %arg8[%c0_15, %c0_16] : memref<1x32xf32, #tpu.memory_space<vmem>>, vector<1x32xf32>
    %18 = vector.broadcast %17 : vector<1x32xf32> to vector<8x32xf32>
    %19 = arith.addf %16, %18 : vector<8x32xf32>
    %20 = vector.extract_strided_slice %19 {offsets = [0, 0], sizes = [8, 16], strides = [1, 1]} : vector<8x32xf32> to vector<8x16xf32>
    %21 = vector.extract_strided_slice %19 {offsets = [0, 16], sizes = [8, 16], strides = [1, 1]} : vector<8x32xf32> to vector<8x16xf32>
    %c0_17 = arith.constant 0 : index
    %c0_18 = arith.constant 0 : index
    %22 = vector.load %arg2[%c0_17, %c0_18] : memref<8x16xf32, #tpu.memory_space<vmem>>, vector<8x16xf32>
    %cst_19 = arith.constant 5.000000e-01 : f32
    %23 = vector.broadcast %cst_19 : f32 to vector<8x16xf32>
    %24 = arith.mulf %23, %21 : vector<8x16xf32>
    %25 = math.exp %24 : vector<8x16xf32>
    %26 = arith.mulf %22, %25 : vector<8x16xf32>
    %27 = arith.addf %20, %26 : vector<8x16xf32>
    %c0_20 = arith.constant 0 : index
    %c0_21 = arith.constant 0 : index
    %28 = vector.load %arg9[%c0_20, %c0_21] : memref<16x32xf32, #tpu.memory_space<vmem>>, vector<16x32xf32>
    %cst_22 = arith.constant dense<0.000000e+00> : vector<8x32xf32>
    %29 = tpu.matmul %27, %28, %cst_22 {dimension_numbers = #tpu.dot_dimension_numbers<[1], [0], [0], [1], [0, 0, 1, 1], [], []>} : vector<8x16xf32>, vector<16x32xf32>, vector<8x32xf32> -> vector<8x32xf32>
    %c0_23 = arith.constant 0 : index
    %c0_24 = arith.constant 0 : index
    %30 = vector.load %arg10[%c0_23, %c0_24] : memref<1x32xf32, #tpu.memory_space<vmem>>, vector<1x32xf32>
    %31 = vector.broadcast %30 : vector<1x32xf32> to vector<8x32xf32>
    %32 = arith.addf %29, %31 : vector<8x32xf32>
    %cst_25 = arith.constant 0.000000e+00 : f32
    %33 = vector.broadcast %cst_25 : f32 to vector<8x32xf32>
    %34 = arith.maximumf %32, %33 : vector<8x32xf32>
    %c0_26 = arith.constant 0 : index
    %c0_27 = arith.constant 0 : index
    %35 = vector.load %arg11[%c0_26, %c0_27] : memref<32x64xf32, #tpu.memory_space<vmem>>, vector<32x64xf32>
    %cst_28 = arith.constant dense<0.000000e+00> : vector<8x64xf32>
    %36 = tpu.matmul %34, %35, %cst_28 {dimension_numbers = #tpu.dot_dimension_numbers<[1], [0], [0], [1], [0, 0, 1, 1], [], []>} : vector<8x32xf32>, vector<32x64xf32>, vector<8x64xf32> -> vector<8x64xf32>
    %c0_29 = arith.constant 0 : index
    %c0_30 = arith.constant 0 : index
    %37 = vector.load %arg12[%c0_29, %c0_30] : memref<1x64xf32, #tpu.memory_space<vmem>>, vector<1x64xf32>
    %38 = vector.broadcast %37 : vector<1x64xf32> to vector<8x64xf32>
    %39 = arith.addf %36, %38 : vector<8x64xf32>
    %cst_31 = arith.constant 0.000000e+00 : f32
    %40 = vector.broadcast %cst_31 : f32 to vector<8x64xf32>
    %41 = arith.maximumf %39, %40 : vector<8x64xf32>
    %c0_32 = arith.constant 0 : index
    %c0_33 = arith.constant 0 : index
    %42 = vector.load %arg13[%c0_32, %c0_33] : memref<64x32xf32, #tpu.memory_space<vmem>>, vector<64x32xf32>
    %cst_34 = arith.constant dense<0.000000e+00> : vector<8x32xf32>
    %43 = tpu.matmul %41, %42, %cst_34 {dimension_numbers = #tpu.dot_dimension_numbers<[1], [0], [0], [1], [0, 0, 1, 1], [], []>} : vector<8x64xf32>, vector<64x32xf32>, vector<8x32xf32> -> vector<8x32xf32>
    %c0_35 = arith.constant 0 : index
    %c0_36 = arith.constant 0 : index
    %44 = vector.load %arg14[%c0_35, %c0_36] : memref<1x32xf32, #tpu.memory_space<vmem>>, vector<1x32xf32>
    %45 = vector.broadcast %44 : vector<1x32xf32> to vector<8x32xf32>
    %46 = arith.addf %43, %45 : vector<8x32xf32>
    %c0_37 = arith.constant 0 : index
    %c0_38 = arith.constant 0 : index
    %47 = vector.load %arg15[%c0_37, %c0_38] : memref<8x32xf32, #tpu.memory_space<vmem>>, vector<8x32xf32>
    tpu.vector_store %arg15[%c0_37, %c0_38], %46 {strides = array<i32>} : memref<8x32xf32, #tpu.memory_space<vmem>>, vector<8x32xf32>,
    %c0_39 = arith.constant 0 : index
    %c0_40 = arith.constant 0 : index
    %48 = vector.load %arg16[%c0_39, %c0_40] : memref<8x32xf32, #tpu.memory_space<vmem>>, vector<8x32xf32>
    tpu.vector_store %arg16[%c0_39, %c0_40], %19 {strides = array<i32>} : memref<8x32xf32, #tpu.memory_space<vmem>>, vector<8x32xf32>,
    return
  }
  func.func @transform_0(%arg0: i32) -> (i32, i32) {
    %c0_i32 = arith.constant 0 : i32
    %c0_i32_0 = arith.constant 0 : i32
    return %arg0, %c0_i32 : i32, i32
  }
  func.func @transform_1(%arg0: i32) -> (i32, i32) {
    %c0_i32 = arith.constant 0 : i32
    %c0_i32_0 = arith.constant 0 : i32
    return %arg0, %c0_i32 : i32, i32
  }
  func.func @transform_2(%arg0: i32) -> (i32, i32) {
    %c0_i32 = arith.constant 0 : i32
    %c0_i32_0 = arith.constant 0 : i32
    %c0_i32_1 = arith.constant 0 : i32
    return %c0_i32, %c0_i32_0 : i32, i32
  }
  func.func @transform_3(%arg0: i32) -> (i32, i32) {
    %c0_i32 = arith.constant 0 : i32
    %c0_i32_0 = arith.constant 0 : i32
    %c0_i32_1 = arith.constant 0 : i32
    return %c0_i32, %c0_i32_0 : i32, i32
  }
  func.func @transform_4(%arg0: i32) -> (i32, i32) {
    %c0_i32 = arith.constant 0 : i32
    %c0_i32_0 = arith.constant 0 : i32
    %c0_i32_1 = arith.constant 0 : i32
    return %c0_i32, %c0_i32_0 : i32, i32
  }
  func.func @transform_5(%arg0: i32) -> (i32, i32) {
    %c0_i32 = arith.constant 0 : i32
    %c0_i32_0 = arith.constant 0 : i32
    %c0_i32_1 = arith.constant 0 : i32
    return %c0_i32, %c0_i32_0 : i32, i32
  }
  func.func @transform_6(%arg0: i32) -> (i32, i32) {
    %c0_i32 = arith.constant 0 : i32
    %c0_i32_0 = arith.constant 0 : i32
    %c0_i32_1 = arith.constant 0 : i32
    return %c0_i32, %c0_i32_0 : i32, i32
  }
  func.func @transform_7(%arg0: i32) -> (i32, i32) {
    %c0_i32 = arith.constant 0 : i32
    %c0_i32_0 = arith.constant 0 : i32
    %c0_i32_1 = arith.constant 0 : i32
    return %c0_i32, %c0_i32_0 : i32, i32
  }
  func.func @transform_8(%arg0: i32) -> (i32, i32) {
    %c0_i32 = arith.constant 0 : i32
    %c0_i32_0 = arith.constant 0 : i32
    %c0_i32_1 = arith.constant 0 : i32
    return %c0_i32, %c0_i32_0 : i32, i32
  }
  func.func @transform_9(%arg0: i32) -> (i32, i32) {
    %c0_i32 = arith.constant 0 : i32
    %c0_i32_0 = arith.constant 0 : i32
    %c0_i32_1 = arith.constant 0 : i32
    return %c0_i32, %c0_i32_0 : i32, i32
  }
  func.func @transform_10(%arg0: i32) -> (i32, i32) {
    %c0_i32 = arith.constant 0 : i32
    %c0_i32_0 = arith.constant 0 : i32
    %c0_i32_1 = arith.constant 0 : i32
    return %c0_i32, %c0_i32_0 : i32, i32
  }
  func.func @transform_11(%arg0: i32) -> (i32, i32) {
    %c0_i32 = arith.constant 0 : i32
    %c0_i32_0 = arith.constant 0 : i32
    %c0_i32_1 = arith.constant 0 : i32
    return %c0_i32, %c0_i32_0 : i32, i32
  }
  func.func @transform_12(%arg0: i32) -> (i32, i32) {
    %c0_i32 = arith.constant 0 : i32
    %c0_i32_0 = arith.constant 0 : i32
    %c0_i32_1 = arith.constant 0 : i32
    return %c0_i32, %c0_i32_0 : i32, i32
  }
  func.func @transform_13(%arg0: i32) -> (i32, i32) {
    %c0_i32 = arith.constant 0 : i32
    %c0_i32_0 = arith.constant 0 : i32
    %c0_i32_1 = arith.constant 0 : i32
    return %c0_i32, %c0_i32_0 : i32, i32
  }
  func.func @transform_14(%arg0: i32) -> (i32, i32) {
    %c0_i32 = arith.constant 0 : i32
    %c0_i32_0 = arith.constant 0 : i32
    return %arg0, %c0_i32 : i32, i32
  }
  func.func @transform_15(%arg0: i32) -> (i32, i32) {
    %c0_i32 = arith.constant 0 : i32
    %c0_i32_0 = arith.constant 0 : i32
    return %arg0, %c0_i32 : i32, i32
  }
}

</mosaic_0001>

<llo_original>
// kernel: tpu_custom_call.1
$region0: #{tpu_custom_call.1}
  #allocation0 [shape = 'u32[]', space=smem, size = 0x4, offset = 0x4, fixed_abs, tag = 'smem constant byte address 0x4 - core index']
  #allocation1 [shape = 'u32[144,128]{1,0:T(1,128)}', space=vmem, size = 0x12000, scoped, tag = 'internal scratch']
  %s0 = inlined_call_operand.vmem [shape: f32[8,32], index: 0, kind: input, shape index: {}]
  %s1 = inlined_call_operand.vmem [shape: f32[8,16], index: 1, kind: input, shape index: {}]
  %s2 = inlined_call_operand.vmem [shape: f32[32,64], index: 2, kind: input, shape index: {}]
  %s3 = inlined_call_operand.vmem [shape: f32[1,64], index: 3, kind: input, shape index: {}]
  %s4 = inlined_call_operand.vmem [shape: f32[64,32], index: 4, kind: input, shape index: {}]
  %s5 = inlined_call_operand.vmem [shape: f32[1,32], index: 5, kind: input, shape index: {}]
  %s6 = inlined_call_operand.vmem [shape: f32[32,32], index: 6, kind: input, shape index: {}]
  %s7 = inlined_call_operand.vmem [shape: f32[1,32], index: 7, kind: input, shape index: {}]
  %s8 = inlined_call_operand.vmem [shape: f32[16,32], index: 8, kind: input, shape index: {}]
  %s9 = inlined_call_operand.vmem [shape: f32[1,32], index: 9, kind: input, shape index: {}]
  %s10 = inlined_call_operand.vmem [shape: f32[32,64], index: 10, kind: input, shape index: {}]
  %s11 = inlined_call_operand.vmem [shape: f32[1,64], index: 11, kind: input, shape index: {}]
  %s12 = inlined_call_operand.vmem [shape: f32[64,32], index: 12, kind: input, shape index: {}]
  %s13 = inlined_call_operand.vmem [shape: f32[1,32], index: 13, kind: input, shape index: {}]
  %s14 = inlined_call_operand.hbm [shape: f32[8,32], index: 14, kind: output, shape index: {0}]
  %s15 = inlined_call_operand.hbm [shape: f32[8,32], index: 15, kind: output, shape index: {1}]
  %16 = xla_tuple %s14, %s15
  %s17 = sld [smem:[#allocation0]]
  $region74: #{tpu_custom_call.1} parent=0
    _
  %s19 = ssub.s32 1, %s17
  %s20 = scalar_select 0, %s19, %s17
  $region1: #{tpu_custom_call.1} parent=0
    #allocation2 [shape = 'u8[4096]{0}', space=vmem, size = 0x1000, scoped, tag = 'output window, operand 0, single buffered']
    #allocation3 [shape = 's32[1]{0}', space=sflag, size = 0x4, scoped, tag = 'scoped memory for tpu_custom_call.1']
    #allocation4 [shape = 'u8[4096]{0}', space=vmem, size = 0x1000, scoped, tag = 'output window, operand 1, single buffered']
    #allocation5 [shape = 's32[1]{0}', space=sflag, size = 0x4, scoped, tag = 'scoped memory for tpu_custom_call.1']
    %21 = vsyncpa [#allocation3], 0
    %22 = vsyncpa [#allocation5], 0
    // Predicated region
    $region2: #{tpu_custom_call.1} parent=1 // pred_check
      _
    $region3: #{tpu_custom_call.1} parent=1 // pred_check_branch
      %24 = sbr.rel (0) target = $region5
    $region4: #{tpu_custom_call.1} parent=1 // pred_region
      _
    $region5: #{tpu_custom_call.1} parent=1 // pred_fallthru
      _
    // Predicated region
    $region6: #{tpu_custom_call.1} parent=1 // pred_check
      _
    $region7: #{tpu_custom_call.1} parent=1 // pred_check_branch
      %26 = sbr.rel (0) target = $region9
    $region8: #{tpu_custom_call.1} parent=1 // pred_region
      _
    $region9: #{tpu_custom_call.1} parent=1 // pred_fallthru
      _
    // Predicated region
    $region10: #{tpu_custom_call.1} parent=1 // pred_check
      _
    $region11: #{tpu_custom_call.1} parent=1 // pred_check_branch
      %28 = sbr.rel (0) target = $region13
    $region12: #{tpu_custom_call.1} parent=1 // pred_region
      _
    $region13: #{tpu_custom_call.1} parent=1 // pred_fallthru
      _
    // Predicated region
    $region14: #{tpu_custom_call.1} parent=1 // pred_check
      _
    $region15: #{tpu_custom_call.1} parent=1 // pred_check_branch
      %30 = sbr.rel (0) target = $region17
    $region16: #{tpu_custom_call.1} parent=1 // pred_region
      _
    $region17: #{tpu_custom_call.1} parent=1 // pred_fallthru
      _
    // Predicated region
    $region18: #{tpu_custom_call.1} parent=1 // pred_check
      _
    $region19: #{tpu_custom_call.1} parent=1 // pred_check_branch
      %32 = sbr.rel (0) target = $region21
    $region20: #{tpu_custom_call.1} parent=1 // pred_region
      _
    $region21: #{tpu_custom_call.1} parent=1 // pred_fallthru
      _
    // Predicated region
    $region22: #{tpu_custom_call.1} parent=1 // pred_check
      _
    $region23: #{tpu_custom_call.1} parent=1 // pred_check_branch
      %34 = sbr.rel (0) target = $region25
    $region24: #{tpu_custom_call.1} parent=1 // pred_region
      _
    $region25: #{tpu_custom_call.1} parent=1 // pred_fallthru
      _
    // Predicated region
    $region26: #{tpu_custom_call.1} parent=1 // pred_check
      _
    $region27: #{tpu_custom_call.1} parent=1 // pred_check_branch
      %36 = sbr.rel (0) target = $region29
    $region28: #{tpu_custom_call.1} parent=1 // pred_region
      _
    $region29: #{tpu_custom_call.1} parent=1 // pred_fallthru
      _
    // Predicated region
    $region30: #{tpu_custom_call.1} parent=1 // pred_check
      _
    $region31: #{tpu_custom_call.1} parent=1 // pred_check_branch
      %38 = sbr.rel (0) target = $region33
    $region32: #{tpu_custom_call.1} parent=1 // pred_region
      _
    $region33: #{tpu_custom_call.1} parent=1 // pred_fallthru
      _
    // Predicated region
    $region34: #{tpu_custom_call.1} parent=1 // pred_check
      _
    $region35: #{tpu_custom_call.1} parent=1 // pred_check_branch
      %40 = sbr.rel (0) target = $region37
    $region36: #{tpu_custom_call.1} parent=1 // pred_region
      _
    $region37: #{tpu_custom_call.1} parent=1 // pred_fallthru
      _
    // Predicated region
    $region38: #{tpu_custom_call.1} parent=1 // pred_check
      _
    $region39: #{tpu_custom_call.1} parent=1 // pred_check_branch
      %42 = sbr.rel (0) target = $region41
    $region40: #{tpu_custom_call.1} parent=1 // pred_region
      _
    $region41: #{tpu_custom_call.1} parent=1 // pred_fallthru
      _
    // Predicated region
    $region42: #{tpu_custom_call.1} parent=1 // pred_check
      _
    $region43: #{tpu_custom_call.1} parent=1 // pred_check_branch
      %44 = sbr.rel (0) target = $region45
    $region44: #{tpu_custom_call.1} parent=1 // pred_region
      _
    $region45: #{tpu_custom_call.1} parent=1 // pred_fallthru
      _
    // Predicated region
    $region46: #{tpu_custom_call.1} parent=1 // pred_check
      _
    $region47: #{tpu_custom_call.1} parent=1 // pred_check_branch
      %46 = sbr.rel (0) target = $region49
    $region48: #{tpu_custom_call.1} parent=1 // pred_region
      _
    $region49: #{tpu_custom_call.1} parent=1 // pred_fallthru
      _
    // Predicated region
    $region50: #{tpu_custom_call.1} parent=1 // pred_check
      _
    $region51: #{tpu_custom_call.1} parent=1 // pred_check_branch
      %48 = sbr.rel (0) target = $region53
    $region52: #{tpu_custom_call.1} parent=1 // pred_region
      _
    $region53: #{tpu_custom_call.1} parent=1 // pred_fallthru
      _
    // Predicated region
    $region54: #{tpu_custom_call.1} parent=1 // pred_check
      _
    $region55: #{tpu_custom_call.1} parent=1 // pred_check_branch
      %50 = sbr.rel (0) target = $region57
    $region56: #{tpu_custom_call.1} parent=1 // pred_region
      _
    $region57: #{tpu_custom_call.1} parent=1 // pred_fallthru
      _
    %v51 = vld [vmem:[%s0] sm:$0xff]
    %v52 = vld [vmem:[%s2] sm:$0xff]
    %v53 = vld [vmem:[%s2 + $0x8] sm:$0xff]
    %v54 = vld [vmem:[%s2 + $0x10] sm:$0xff]
    %v55 = vld [vmem:[%s2 + $0x18] sm:$0xff]
    %v56 = vld [vmem:[%s3] sm:$0x1]
    %v58 = vlaneseq
    %v59 = vshrl.u32 %v58, 7
    %v60 = vsub.s32 0, %v59
    %v61 = vrot.slane %v56, %v60
    %vm63 = vcmask 261120
    %v65 = vsel %vm63, %v51, 0
    %67 = vmatprep.subr.mxu0 0.0
    %68 = vmatpush1.msra.mxu0 %v52
    %69 = vmatprep.subr.mxu0 0.0
    %70 = vmatpush1.msra.mxu0 %v53
    %71 = vmatprep.subr.mxu0 0.0
    %72 = vmatpush1.msra.mxu0 %v54
    %73 = vmatprep.subr.mxu0 0.0
    %74 = vmatpush1.msra.mxu0 %v55
    %75 = vmatprep.subr.mxu0 0.0
    %76 = vmatpush1.msra.mxu0 0.0
    %77 = vmatprep.subr.mxu0 0.0
    %78 = vmatpush1.msra.mxu0 0.0
    %79 = vmatprep.subr.mxu0 0.0
    %80 = vmatpush1.msra.mxu0 0.0
    %81 = vmatprep.subr.mxu0 0.0
    %82 = vmatpush1.msra.mxu0 0.0
    %83 = vmatprep.subr.mxu0 0.0
    %84 = vmatpush1.msra.mxu0 0.0
    %85 = vmatprep.subr.mxu0 0.0
    %86 = vmatpush1.msra.mxu0 0.0
    %87 = vmatprep.subr.mxu0 0.0
    %88 = vmatpush1.msra.mxu0 0.0
    %89 = vmatprep.subr.mxu0 0.0
    %90 = vmatpush1.msra.mxu0 0.0
    %91 = vmatprep.subr.mxu0 0.0
    %92 = vmatpush1.msra.mxu0 0.0
    %93 = vmatprep.subr.mxu0 0.0
    %94 = vmatpush1.msra.mxu0 0.0
    %95 = vmatprep.subr.mxu0 0.0
    %96 = vmatpush1.msra.mxu0 0.0
    %97 = vmatprep.subr.mxu0 0.0
    %98 = vmatpush1.msra.mxu0 0.0
    %99 = vmatprep.subr.mxu0 0.0
    %100 = vmatpush1.msra.mxu0 0.0
    %101 = vmatprep.subr.mxu0 0.0
    %102 = vmatpush1.msra.mxu0 0.0
    %103 = vmatprep.subr.mxu0 0.0
    %104 = vmatpush1.msra.mxu0 0.0
    %105 = vmatprep.subr.mxu0 0.0
    %106 = vmatpush1.msra.mxu0 0.0
    %107 = vmatprep.subr.mxu0 0.0
    %108 = vmatpush1.msra.mxu0 0.0
    %109 = vmatprep.subr.mxu0 0.0
    %110 = vmatpush1.msra.mxu0 0.0
    %111 = vmatprep.subr.mxu0 0.0
    %112 = vmatpush1.msra.mxu0 0.0
    %113 = vmatprep.subr.mxu0 0.0
    %114 = vmatpush1.msra.mxu0 0.0
    %115 = vmatprep.subr.mxu0 0.0
    %116 = vmatpush1.msra.mxu0 0.0
    %117 = vmatprep.subr.mxu0 0.0
    %118 = vmatpush1.msra.mxu0 0.0
    %119 = vmatprep.subr.mxu0 0.0
    %120 = vmatpush1.msra.mxu0 0.0
    %121 = vmatprep.subr.mxu0 0.0
    %122 = vmatpush1.msra.mxu0 0.0
    %123 = vmatprep.subr.mxu0 0.0
    %124 = vmatpush1.msra.mxu0 0.0
    %125 = vmatprep.subr.mxu0 0.0
    %126 = vmatpush1.msra.mxu0 0.0
    %127 = vmatprep.subr.mxu0 0.0
    %128 = vmatpush1.msra.mxu0 0.0
    %129 = vmatprep.subr.mxu0 0.0
    %130 = vmatpush1.msra.mxu0 0.0
    %131 = vmatprep.mubr.f32.mxu0 0.0
    %132 = vmatmul.mubr.f32.gmra.mrb[0].mxu0 %v65
    %v133 = vpop.f32.mrb[0].mxu0
    %v134 = vadd.f32 %v61, %v133
    %v135 = vpop.f32.mrb[0].mxu0
    %136 = vdwg.mxu0
    %v137 = vmax.f32 %v134, 0.0
    %v138 = vld [vmem:[%s4] sm:$0xff]
    %v139 = vld [vmem:[%s4 + $0x8] sm:$0xff]
    %v140 = vld [vmem:[%s4 + $0x10] sm:$0xff]
    %v141 = vld [vmem:[%s4 + $0x18] sm:$0xff]
    %v142 = vld [vmem:[%s4 + $0x20] sm:$0xff]
    %v143 = vld [vmem:[%s4 + $0x28] sm:$0xff]
    %v144 = vld [vmem:[%s4 + $0x30] sm:$0xff]
    %v145 = vld [vmem:[%s4 + $0x38] sm:$0xff]
    %v146 = vld [vmem:[%s5] sm:$0x1]
    %v148 = vlaneseq
    %v149 = vshrl.u32 %v148, 7
    %v150 = vsub.s32 0, %v149
    %v151 = vrot.slane %v146, %v150
    %vm153 = vcmask 523264
    %v155 = vsel %vm153, %v137, 0
    %157 = vmatprep.subr.mxu0 0.0
    %158 = vmatpush1.msra.mxu0 %v138
    %159 = vmatprep.subr.mxu0 0.0
    %160 = vmatpush1.msra.mxu0 %v139
    %161 = vmatprep.subr.mxu0 0.0
    %162 = vmatpush1.msra.mxu0 %v140
    %163 = vmatprep.subr.mxu0 0.0
    %164 = vmatpush1.msra.mxu0 %v141
    %165 = vmatprep.subr.mxu0 0.0
    %166 = vmatpush1.msra.mxu0 %v142
    %167 = vmatprep.subr.mxu0 0.0
    %168 = vmatpush1.msra.mxu0 %v143
    %169 = vmatprep.subr.mxu0 0.0
    %170 = vmatpush1.msra.mxu0 %v144
    %171 = vmatprep.subr.mxu0 0.0
    %172 = vmatpush1.msra.mxu0 %v145
    %173 = vmatprep.subr.mxu0 0.0
    %174 = vmatpush1.msra.mxu0 0.0
    %175 = vmatprep.subr.mxu0 0.0
    %176 = vmatpush1.msra.mxu0 0.0
    %177 = vmatprep.subr.mxu0 0.0
    %178 = vmatpush1.msra.mxu0 0.0
    %179 = vmatprep.subr.mxu0 0.0
    %180 = vmatpush1.msra.mxu0 0.0
    %181 = vmatprep.subr.mxu0 0.0
    %182 = vmatpush1.msra.mxu0 0.0
    %183 = vmatprep.subr.mxu0 0.0
    %184 = vmatpush1.msra.mxu0 0.0
    %185 = vmatprep.subr.mxu0 0.0
    %186 = vmatpush1.msra.mxu0 0.0
    %187 = vmatprep.subr.mxu0 0.0
    %188 = vmatpush1.msra.mxu0 0.0
    %189 = vmatprep.subr.mxu0 0.0
    %190 = vmatpush1.msra.mxu0 0.0
    %191 = vmatprep.subr.mxu0 0.0
    %192 = vmatpush1.msra.mxu0 0.0
    %193 = vmatprep.subr.mxu0 0.0
    %194 = vmatpush1.msra.mxu0 0.0
    %195 = vmatprep.subr.mxu0 0.0
    %196 = vmatpush1.msra.mxu0 0.0
    %197 = vmatprep.subr.mxu0 0.0
    %198 = vmatpush1.msra.mxu0 0.0
    %199 = vmatprep.subr.mxu0 0.0
    %200 = vmatpush1.msra.mxu0 0.0
    %201 = vmatprep.subr.mxu0 0.0
    %202 = vmatpush1.msra.mxu0 0.0
    %203 = vmatprep.subr.mxu0 0.0
    %204 = vmatpush1.msra.mxu0 0.0
    %205 = vmatprep.subr.mxu0 0.0
    %206 = vmatpush1.msra.mxu0 0.0
    %207 = vmatprep.subr.mxu0 0.0
    %208 = vmatpush1.msra.mxu0 0.0
    %209 = vmatprep.subr.mxu0 0.0
    %210 = vmatpush1.msra.mxu0 0.0
    %211 = vmatprep.subr.mxu0 0.0
    %212 = vmatpush1.msra.mxu0 0.0
    %213 = vmatprep.subr.mxu0 0.0
    %214 = vmatpush1.msra.mxu0 0.0
    %215 = vmatprep.subr.mxu0 0.0
    %216 = vmatpush1.msra.mxu0 0.0
    %217 = vmatprep.subr.mxu0 0.0
    %218 = vmatpush1.msra.mxu0 0.0
    %219 = vmatprep.subr.mxu0 0.0
    %220 = vmatpush1.msra.mxu0 0.0
    %221 = vmatprep.mubr.f32.mxu0 0.0
    %222 = vmatmul.mubr.f32.gmra.mrb[0].mxu0 %v155
    %v223 = vpop.f32.mrb[0].mxu0
    %v224 = vadd.f32 %v151, %v223
    %v225 = vpop.f32.mrb[0].mxu0
    %226 = vdwg.mxu0
    %v227 = vmax.f32 %v224, 0.0
    %v228 = vld [vmem:[%s6] sm:$0xff]
    %v229 = vld [vmem:[%s6 + $0x8] sm:$0xff]
    %v230 = vld [vmem:[%s6 + $0x10] sm:$0xff]
    %v231 = vld [vmem:[%s6 + $0x18] sm:$0xff]
    %v232 = vld [vmem:[%s7] sm:$0x1]
    %v234 = vlaneseq
    %v235 = vshrl.u32 %v234, 7
    %v236 = vsub.s32 0, %v235
    %v237 = vrot.slane %v232, %v236
    %v240 = vsel %vm63, %v227, 0
    %242 = vmatprep.subr.mxu0 0.0
    %243 = vmatpush1.msra.mxu0 %v228
    %244 = vmatprep.subr.mxu0 0.0
    %245 = vmatpush1.msra.mxu0 %v229
    %246 = vmatprep.subr.mxu0 0.0
    %247 = vmatpush1.msra.mxu0 %v230
    %248 = vmatprep.subr.mxu0 0.0
    %249 = vmatpush1.msra.mxu0 %v231
    %250 = vmatprep.subr.mxu0 0.0
    %251 = vmatpush1.msra.mxu0 0.0
    %252 = vmatprep.subr.mxu0 0.0
    %253 = vmatpush1.msra.mxu0 0.0
    %254 = vmatprep.subr.mxu0 0.0
    %255 = vmatpush1.msra.mxu0 0.0
    %256 = vmatprep.subr.mxu0 0.0
    %257 = vmatpush1.msra.mxu0 0.0
    %258 = vmatprep.subr.mxu0 0.0
    %259 = vmatpush1.msra.mxu0 0.0
    %260 = vmatprep.subr.mxu0 0.0
    %261 = vmatpush1.msra.mxu0 0.0
    %262 = vmatprep.subr.mxu0 0.0
    %263 = vmatpush1.msra.mxu0 0.0
    %264 = vmatprep.subr.mxu0 0.0
    %265 = vmatpush1.msra.mxu0 0.0
    %266 = vmatprep.subr.mxu0 0.0
    %267 = vmatpush1.msra.mxu0 0.0
    %268 = vmatprep.subr.mxu0 0.0
    %269 = vmatpush1.msra.mxu0 0.0
    %270 = vmatprep.subr.mxu0 0.0
    %271 = vmatpush1.msra.mxu0 0.0
    %272 = vmatprep.subr.mxu0 0.0
    %273 = vmatpush1.msra.mxu0 0.0
    %274 = vmatprep.subr.mxu0 0.0
    %275 = vmatpush1.msra.mxu0 0.0
    %276 = vmatprep.subr.mxu0 0.0
    %277 = vmatpush1.msra.mxu0 0.0
    %278 = vmatprep.subr.mxu0 0.0
    %279 = vmatpush1.msra.mxu0 0.0
    %280 = vmatprep.subr.mxu0 0.0
    %281 = vmatpush1.msra.mxu0 0.0
    %282 = vmatprep.subr.mxu0 0.0
    %283 = vmatpush1.msra.mxu0 0.0
    %284 = vmatprep.subr.mxu0 0.0
    %285 = vmatpush1.msra.mxu0 0.0
    %286 = vmatprep.subr.mxu0 0.0
    %287 = vmatpush1.msra.mxu0 0.0
    %288 = vmatprep.subr.mxu0 0.0
    %289 = vmatpush1.msra.mxu0 0.0
    %290 = vmatprep.subr.mxu0 0.0
    %291 = vmatpush1.msra.mxu0 0.0
    %292 = vmatprep.subr.mxu0 0.0
    %293 = vmatpush1.msra.mxu0 0.0
    %294 = vmatprep.subr.mxu0 0.0
    %295 = vmatpush1.msra.mxu0 0.0
    %296 = vmatprep.subr.mxu0 0.0
    %297 = vmatpush1.msra.mxu0 0.0
    %298 = vmatprep.subr.mxu0 0.0
    %299 = vmatpush1.msra.mxu0 0.0
    %300 = vmatprep.subr.mxu0 0.0
    %301 = vmatpush1.msra.mxu0 0.0
    %302 = vmatprep.subr.mxu0 0.0
    %303 = vmatpush1.msra.mxu0 0.0
    %304 = vmatprep.subr.mxu0 0.0
    %305 = vmatpush1.msra.mxu0 0.0
    %306 = vmatprep.mubr.f32.mxu0 0.0
    %307 = vmatmul.mubr.f32.gmra.mrb[0].mxu0 %v240
    %v308 = vpop.f32.mrb[0].mxu0
    %v309 = vadd.f32 %v237, %v308
    %v310 = vpop.f32.mrb[0].mxu0
    %311 = vdwg.mxu0
    %v312 = vld [vmem:[%s1] sm:$0xff]
    %v313 = vmul.f32 %v309, 0.5
    %v314 = vmul.f32 %v313, 1.442695
    %v315 = vpow.pop %v314
    %317 = vrot.lane.b32.xlu0 %v315, 112
    %v318 = vpop.permute.xlu0 %317
    %v320 = vmul.f32 %v312, %v318
    %v321 = vadd.f32 %v309, %v320
    %v322 = vld [vmem:[%s8] sm:$0xff]
    %v323 = vld [vmem:[%s8 + $0x8] sm:$0xff]
    %v324 = vld [vmem:[%s9] sm:$0x1]
    %v326 = vlaneseq
    %v327 = vshrl.u32 %v326, 7
    %v328 = vsub.s32 0, %v327
    %v329 = vrot.slane %v324, %v328
    %vm331 = vcmask 130048
    %v333 = vsel %vm331, %v321, 0
    %335 = vmatprep.subr.mxu0 0.0
    %336 = vmatpush1.msra.mxu0 %v322
    %337 = vmatprep.subr.mxu0 0.0
    %338 = vmatpush1.msra.mxu0 %v323
    %339 = vmatprep.subr.mxu0 0.0
    %340 = vmatpush1.msra.mxu0 0.0
    %341 = vmatprep.subr.mxu0 0.0
    %342 = vmatpush1.msra.mxu0 0.0
    %343 = vmatprep.subr.mxu0 0.0
    %344 = vmatpush1.msra.mxu0 0.0
    %345 = vmatprep.subr.mxu0 0.0
    %346 = vmatpush1.msra.mxu0 0.0
    %347 = vmatprep.subr.mxu0 0.0
    %348 = vmatpush1.msra.mxu0 0.0
    %349 = vmatprep.subr.mxu0 0.0
    %350 = vmatpush1.msra.mxu0 0.0
    %351 = vmatprep.subr.mxu0 0.0
    %352 = vmatpush1.msra.mxu0 0.0
    %353 = vmatprep.subr.mxu0 0.0
    %354 = vmatpush1.msra.mxu0 0.0
    %355 = vmatprep.subr.mxu0 0.0
    %356 = vmatpush1.msra.mxu0 0.0
    %357 = vmatprep.subr.mxu0 0.0
    %358 = vmatpush1.msra.mxu0 0.0
    %359 = vmatprep.subr.mxu0 0.0
    %360 = vmatpush1.msra.mxu0 0.0
    %361 = vmatprep.subr.mxu0 0.0
    %362 = vmatpush1.msra.mxu0 0.0
    %363 = vmatprep.subr.mxu0 0.0
    %364 = vmatpush1.msra.mxu0 0.0
    %365 = vmatprep.subr.mxu0 0.0
    %366 = vmatpush1.msra.mxu0 0.0
    %367 = vmatprep.subr.mxu0 0.0
    %368 = vmatpush1.msra.mxu0 0.0
    %369 = vmatprep.subr.mxu0 0.0
    %370 = vmatpush1.msra.mxu0 0.0
    %371 = vmatprep.subr.mxu0 0.0
    %372 = vmatpush1.msra.mxu0 0.0
    %373 = vmatprep.subr.mxu0 0.0
    %374 = vmatpush1.msra.mxu0 0.0
    %375 = vmatprep.subr.mxu0 0.0
    %376 = vmatpush1.msra.mxu0 0.0
    %377 = vmatprep.subr.mxu0 0.0
    %378 = vmatpush1.msra.mxu0 0.0
    %379 = vmatprep.subr.mxu0 0.0
    %380 = vmatpush1.msra.mxu0 0.0
    %381 = vmatprep.subr.mxu0 0.0
    %382 = vmatpush1.msra.mxu0 0.0
    %383 = vmatprep.subr.mxu0 0.0
    %384 = vmatpush1.msra.mxu0 0.0
    %385 = vmatprep.subr.mxu0 0.0
    %386 = vmatpush1.msra.mxu0 0.0
    %387 = vmatprep.subr.mxu0 0.0
    %388 = vmatpush1.msra.mxu0 0.0
    %389 = vmatprep.subr.mxu0 0.0
    %390 = vmatpush1.msra.mxu0 0.0
    %391 = vmatprep.subr.mxu0 0.0
    %392 = vmatpush1.msra.mxu0 0.0
    %393 = vmatprep.subr.mxu0 0.0
    %394 = vmatpush1.msra.mxu0 0.0
    %395 = vmatprep.subr.mxu0 0.0
    %396 = vmatpush1.msra.mxu0 0.0
    %397 = vmatprep.subr.mxu0 0.0
    %398 = vmatpush1.msra.mxu0 0.0
    %399 = vmatprep.mubr.f32.mxu0 0.0
    %400 = vmatmul.mubr.f32.gmra.mrb[0].mxu0 %v333
    %v401 = vpop.f32.mrb[0].mxu0
    %v402 = vadd.f32 %v329, %v401
    %v403 = vpop.f32.mrb[0].mxu0
    %404 = vdwg.mxu0
    %v405 = vmax.f32 %v402, 0.0
    %v406 = vld [vmem:[%s10] sm:$0xff]
    %v407 = vld [vmem:[%s10 + $0x8] sm:$0xff]
    %v408 = vld [vmem:[%s10 + $0x10] sm:$0xff]
    %v409 = vld [vmem:[%s10 + $0x18] sm:$0xff]
    %v410 = vld [vmem:[%s11] sm:$0x1]
    %v412 = vlaneseq
    %v413 = vshrl.u32 %v412, 7
    %v414 = vsub.s32 0, %v413
    %v415 = vrot.slane %v410, %v414
    %v418 = vsel %vm63, %v405, 0
    %420 = vmatprep.subr.mxu0 0.0
    %421 = vmatpush1.msra.mxu0 %v406
    %422 = vmatprep.subr.mxu0 0.0
    %423 = vmatpush1.msra.mxu0 %v407
    %424 = vmatprep.subr.mxu0 0.0
    %425 = vmatpush1.msra.mxu0 %v408
    %426 = vmatprep.subr.mxu0 0.0
    %427 = vmatpush1.msra.mxu0 %v409
    %428 = vmatprep.subr.mxu0 0.0
    %429 = vmatpush1.msra.mxu0 0.0
    %430 = vmatprep.subr.mxu0 0.0
    %431 = vmatpush1.msra.mxu0 0.0
    %432 = vmatprep.subr.mxu0 0.0
    %433 = vmatpush1.msra.mxu0 0.0
    %434 = vmatprep.subr.mxu0 0.0
    %435 = vmatpush1.msra.mxu0 0.0
    %436 = vmatprep.subr.mxu0 0.0
    %437 = vmatpush1.msra.mxu0 0.0
    %438 = vmatprep.subr.mxu0 0.0
    %439 = vmatpush1.msra.mxu0 0.0
    %440 = vmatprep.subr.mxu0 0.0
    %441 = vmatpush1.msra.mxu0 0.0
    %442 = vmatprep.subr.mxu0 0.0
    %443 = vmatpush1.msra.mxu0 0.0
    %444 = vmatprep.subr.mxu0 0.0
    %445 = vmatpush1.msra.mxu0 0.0
    %446 = vmatprep.subr.mxu0 0.0
    %447 = vmatpush1.msra.mxu0 0.0
    %448 = vmatprep.subr.mxu0 0.0
    %449 = vmatpush1.msra.mxu0 0.0
    %450 = vmatprep.subr.mxu0 0.0
    %451 = vmatpush1.msra.mxu0 0.0
    %452 = vmatprep.subr.mxu0 0.0
    %453 = vmatpush1.msra.mxu0 0.0
    %454 = vmatprep.subr.mxu0 0.0
    %455 = vmatpush1.msra.mxu0 0.0
    %456 = vmatprep.subr.mxu0 0.0
    %457 = vmatpush1.msra.mxu0 0.0
    %458 = vmatprep.subr.mxu0 0.0
    %459 = vmatpush1.msra.mxu0 0.0
    %460 = vmatprep.subr.mxu0 0.0
    %461 = vmatpush1.msra.mxu0 0.0
    %462 = vmatprep.subr.mxu0 0.0
    %463 = vmatpush1.msra.mxu0 0.0
    %464 = vmatprep.subr.mxu0 0.0
    %465 = vmatpush1.msra.mxu0 0.0
    %466 = vmatprep.subr.mxu0 0.0
    %467 = vmatpush1.msra.mxu0 0.0
    %468 = vmatprep.subr.mxu0 0.0
    %469 = vmatpush1.msra.mxu0 0.0
    %470 = vmatprep.subr.mxu0 0.0
    %471 = vmatpush1.msra.mxu0 0.0
    %472 = vmatprep.subr.mxu0 0.0
    %473 = vmatpush1.msra.mxu0 0.0
    %474 = vmatprep.subr.mxu0 0.0
    %475 = vmatpush1.msra.mxu0 0.0
    %476 = vmatprep.subr.mxu0 0.0
    %477 = vmatpush1.msra.mxu0 0.0
    %478 = vmatprep.subr.mxu0 0.0
    %479 = vmatpush1.msra.mxu0 0.0
    %480 = vmatprep.subr.mxu0 0.0
    %481 = vmatpush1.msra.mxu0 0.0
    %482 = vmatprep.subr.mxu0 0.0
    %483 = vmatpush1.msra.mxu0 0.0
    %484 = vmatprep.mubr.f32.mxu0 0.0
    %485 = vmatmul.mubr.f32.gmra.mrb[0].mxu0 %v418
    %v486 = vpop.f32.mrb[0].mxu0
    %v487 = vadd.f32 %v415, %v486
    %v488 = vpop.f32.mrb[0].mxu0
    %489 = vdwg.mxu0
    %v490 = vmax.f32 %v487, 0.0
    %v491 = vld [vmem:[%s12] sm:$0xff]
    %v492 = vld [vmem:[%s12 + $0x8] sm:$0xff]
    %v493 = vld [vmem:[%s12 + $0x10] sm:$0xff]
    %v494 = vld [vmem:[%s12 + $0x18] sm:$0xff]
    %v495 = vld [vmem:[%s12 + $0x20] sm:$0xff]
    %v496 = vld [vmem:[%s12 + $0x28] sm:$0xff]
    %v497 = vld [vmem:[%s12 + $0x30] sm:$0xff]
    %v498 = vld [vmem:[%s12 + $0x38] sm:$0xff]
    %v499 = vld [vmem:[%s13] sm:$0x1]
    %v501 = vlaneseq
    %v502 = vshrl.u32 %v501, 7
    %v503 = vsub.s32 0, %v502
    %v504 = vrot.slane %v499, %v503
    %v507 = vsel %vm153, %v490, 0
    %509 = vmatprep.subr.mxu0 0.0
    %510 = vmatpush1.msra.mxu0 %v491
    %511 = vmatprep.subr.mxu0 0.0
    %512 = vmatpush1.msra.mxu0 %v492
    %513 = vmatprep.subr.mxu0 0.0
    %514 = vmatpush1.msra.mxu0 %v493
    %515 = vmatprep.subr.mxu0 0.0
    %516 = vmatpush1.msra.mxu0 %v494
    %517 = vmatprep.subr.mxu0 0.0
    %518 = vmatpush1.msra.mxu0 %v495
    %519 = vmatprep.subr.mxu0 0.0
    %520 = vmatpush1.msra.mxu0 %v496
    %521 = vmatprep.subr.mxu0 0.0
    %522 = vmatpush1.msra.mxu0 %v497
    %523 = vmatprep.subr.mxu0 0.0
    %524 = vmatpush1.msra.mxu0 %v498
    %525 = vmatprep.subr.mxu0 0.0
    %526 = vmatpush1.msra.mxu0 0.0
    %527 = vmatprep.subr.mxu0 0.0
    %528 = vmatpush1.msra.mxu0 0.0
    %529 = vmatprep.subr.mxu0 0.0
    %530 = vmatpush1.msra.mxu0 0.0
    %531 = vmatprep.subr.mxu0 0.0
    %532 = vmatpush1.msra.mxu0 0.0
    %533 = vmatprep.subr.mxu0 0.0
    %534 = vmatpush1.msra.mxu0 0.0
    %535 = vmatprep.subr.mxu0 0.0
    %536 = vmatpush1.msra.mxu0 0.0
    %537 = vmatprep.subr.mxu0 0.0
    %538 = vmatpush1.msra.mxu0 0.0
    %539 = vmatprep.subr.mxu0 0.0
    %540 = vmatpush1.msra.mxu0 0.0
    %541 = vmatprep.subr.mxu0 0.0
    %542 = vmatpush1.msra.mxu0 0.0
    %543 = vmatprep.subr.mxu0 0.0
    %544 = vmatpush1.msra.mxu0 0.0
    %545 = vmatprep.subr.mxu0 0.0
    %546 = vmatpush1.msra.mxu0 0.0
    %547 = vmatprep.subr.mxu0 0.0
    %548 = vmatpush1.msra.mxu0 0.0
    %549 = vmatprep.subr.mxu0 0.0
    %550 = vmatpush1.msra.mxu0 0.0
    %551 = vmatprep.subr.mxu0 0.0
    %552 = vmatpush1.msra.mxu0 0.0
    %553 = vmatprep.subr.mxu0 0.0
    %554 = vmatpush1.msra.mxu0 0.0
    %555 = vmatprep.subr.mxu0 0.0
    %556 = vmatpush1.msra.mxu0 0.0
    %557 = vmatprep.subr.mxu0 0.0
    %558 = vmatpush1.msra.mxu0 0.0
    %559 = vmatprep.subr.mxu0 0.0
    %560 = vmatpush1.msra.mxu0 0.0
    %561 = vmatprep.subr.mxu0 0.0
    %562 = vmatpush1.msra.mxu0 0.0
    %563 = vmatprep.subr.mxu0 0.0
    %564 = vmatpush1.msra.mxu0 0.0
    %565 = vmatprep.subr.mxu0 0.0
    %566 = vmatpush1.msra.mxu0 0.0
    %567 = vmatprep.subr.mxu0 0.0
    %568 = vmatpush1.msra.mxu0 0.0
    %569 = vmatprep.subr.mxu0 0.0
    %570 = vmatpush1.msra.mxu0 0.0
    %571 = vmatprep.subr.mxu0 0.0
    %572 = vmatpush1.msra.mxu0 0.0
    %573 = vmatprep.mubr.f32.mxu0 0.0
    %574 = vmatmul.mubr.f32.gmra.mrb[0].mxu0 %v507
    %v575 = vpop.f32.mrb[0].mxu0
    %v576 = vadd.f32 %v504, %v575
    %v577 = vpop.f32.mrb[0].mxu0
    %578 = vdwg.mxu0
    %579 = vst.msk [vmem:[#allocation2] sm:$0xff] %vm63, %v576
    %580 = vst.msk [vmem:[#allocation4] sm:$0xff] %vm63, %v309
    // Predicated region
    $region58: #{tpu_custom_call.1} parent=1 // pred_check
      _
    $region59: #{tpu_custom_call.1} parent=1 // pred_check_branch
      %582 = sbr.rel (0) target = $region61
    $region60: #{tpu_custom_call.1} parent=1 // pred_region
      %s584 = ssub.s32 128, 128
      %585 = vsyncadd [#allocation3], %s584
      %s587 = sshll.u32 [#allocation2], 4
      %s588 = int_to_ptr.vmem [resolvable:$true] %s587
      %590 = dma.vmem_to_hbm [thread:$0]  %s588, 128, %s14, [#allocation3]
    $region61: #{tpu_custom_call.1} parent=1 // pred_fallthru
      _
    // Predicated region
    $region62: #{tpu_custom_call.1} parent=1 // pred_check
      _
    $region63: #{tpu_custom_call.1} parent=1 // pred_check_branch
      %592 = sbr.rel (0) target = $region65
    $region64: #{tpu_custom_call.1} parent=1 // pred_region
      %s594 = ssub.s32 128, 128
      %595 = vsyncadd [#allocation5], %s594
      %s597 = sshll.u32 [#allocation4], 4
      %s598 = int_to_ptr.vmem [resolvable:$true] %s597
      %600 = dma.vmem_to_hbm [thread:$0]  %s598, 128, %s15, [#allocation5]
    $region65: #{tpu_custom_call.1} parent=1 // pred_fallthru
      _
    // Predicated region
    $region66: #{tpu_custom_call.1} parent=1 // pred_check
      _
    $region67: #{tpu_custom_call.1} parent=1 // pred_check_branch
      %602 = sbr.rel (0) target = $region69
    $region68: #{tpu_custom_call.1} parent=1 // pred_region
      %603 = dma.done [#allocation3], 128
    $region69: #{tpu_custom_call.1} parent=1 // pred_fallthru
      _
    // Predicated region
    $region70: #{tpu_custom_call.1} parent=1 // pred_check
      _
    $region71: #{tpu_custom_call.1} parent=1 // pred_check_branch
      %605 = sbr.rel (0) target = $region73
    $region72: #{tpu_custom_call.1} parent=1 // pred_region
      %606 = dma.done [#allocation5], 128
    $region73: #{tpu_custom_call.1} parent=1 // pred_fallthru
      _
    %607 = vsyncpa [#allocation3], 1
    %608 = vsyncpa [#allocation5], 1

</llo_original>
